<compile_context>
chip_gen: v7x
topology: tpu7x:2x2x1
jax: 0.10.0
libtpu: 0.0.40
codegen_flags: <defaults>
</compile_context>

<pallas_src>
import functools

import jax
import jax.numpy as jnp
from jax.experimental import pallas as pl
from jax.experimental.pallas import tpu as pltpu

EPS = 0.1          # label smoothing epsilon
REG_LAMBDA = 0.3   # large-margin regularization weight
BIG_NEG = 1.0e6    # target-logit suppression constant (reference only)


def _loss_kernel(x_ref, t_ref, o_ref, *, c_total, n_valid, tile_n,
                 tiles_per_group, eps, reg_lambda):
    p = pl.program_id(0)   # parallel (core-group) axis
    i = pl.program_id(1)   # reduction axis over this group's row tiles

    @pl.when(i == 0)
    def _init():
        o_ref[...] = jnp.zeros_like(o_ref)

    x = x_ref[...].astype(jnp.float32)                 # (tn, C) logits tile
    tgt = t_ref[...]                                   # (tn, 1) int32 targets
    tn = x.shape[0]
    C = c_total

    cls = jax.lax.broadcasted_iota(jnp.int32, x.shape, 1)
    is_t = cls == tgt                                  # one-hot target mask

    # ---- single softmax pass: 1 exp + 5 lane reductions over (tn, C) ----
    m = jnp.max(x, axis=-1, keepdims=True)             # (tn, 1)
    t = x - m                                          # shifted logits
    e = jnp.exp(t)                                     # the only (tn, C) exp
    s = jnp.sum(e, axis=-1, keepdims=True)             # softmax denominator
    sum_t = jnp.sum(t, axis=-1, keepdims=True)
    sum_et = jnp.sum(e * t, axis=-1, keepdims=True)
    t_t = jnp.sum(jnp.where(is_t, t, 0.0), axis=-1, keepdims=True)

    # per-row scalar math ((tn, 1) shapes) -------------------------------
    log_s = jnp.log(s)
    inv_s = pl.reciprocal(s, approx=True)

    # label-smoothing term: -sum_j log_softmax(x)_j
    sum_lp = sum_t - C * log_s
    ls_row = -sum_lp

    # F.cross_entropy(log_preds, target): log_softmax(log_preds) == log_preds
    # (sum_j exp(lp_j) == 1), so the reference's 2nd log_softmax is identity.
    lp_t = t_t - log_s
    ce_row = -lp_t

    # large-margin regularizer, folded into per-row scalars.
    # With X = log_preds - 1e6 * mask (exp(-1e6) underflows to exactly 0):
    #   q_j  = softmax(X)_j     = p_j / rem            for j != t
    #   lq_j = log_softmax(X)_j = lp_j - log(rem)      for j != t
    # where rem = sum_{j!=t} p_j = (s - e_t) / s, so
    #   sum_{j!=t} q_j*lq_j = (1/rem) * (S_all - p_t*lp_t) - log(rem)
    #   sum_{j!=t} lq_j     = (sum_lp - lp_t) - (C-1)*log(rem)
    # with S_all = sum_j p_j*lp_j = (sum_j e_j*t_j)/s - log(s).
    e_t = jnp.exp(t_t)                                 # (tn, 1) cheap exp
    p_t = e_t * inv_s
    rem_sum = jnp.maximum(s - e_t, 1e-12)              # sum of non-target exps
    inv_rem = s * pl.reciprocal(rem_sum, approx=True)  # 1 / rem
    log_rem = jnp.log(rem_sum) - log_s                 # log(rem)

    s_all = inv_s * sum_et - log_s                     # sum_j p_j * lp_j
    s_nt = s_all - p_t * lp_t                          # sum_{j!=t} p_j * lp_j
    sum_lp_nt = sum_lp - lp_t                          # sum_{j!=t} lp_j

    reg_row = 0.5 * (inv_rem * s_nt - log_rem
                     - (1.0 / (C - 1)) * (sum_lp_nt - (C - 1) * log_rem))

    # ---- fuse the three per-row terms (linear in the 'mean' reduction) ----
    loss_row = (eps / C) * ls_row + (1.0 - eps) * (ce_row + reg_lambda * reg_row)

    # ---- mask padded tail rows (N need not divide tile_n) ----
    row0 = (p * tiles_per_group + i) * tile_n
    rows = row0 + jax.lax.broadcasted_iota(jnp.int32, (tn, 1), 0)
    loss_row = jnp.where(rows < n_valid, loss_row, 0.0)

    # accumulate this tile's partial sum into this group's resident out block
    tile_sum = jnp.sum(loss_row, keepdims=True)        # (1, 1)
    o_ref[...] += tile_sum.reshape(1, 1, 1)            # (1, 1, 1)


def _round_up(x, m):
    return ((x + m - 1) // m) * m


def _pick_tile_n(n, c):
    """Pick the batch tile from a VMEM budget instead of hard-coding it.

    Target ~2 MiB for the (tile_n, C) f32 logits tile; the kernel keeps about
    5 live (tile_n, C) f32 temporaries plus the double-buffered input tile, so
    the effective footprint is ~7-8x that (~16 MiB) -- safely inside the 32 MiB
    scoped-VMEM limit requested below on every generation (v5e/v6e/v7x).
    """
    target_tile_bytes = 2 * 1024 * 1024
    t = max(8, target_tile_bytes // (4 * c))
    t = min(t, 1024)                # 256-1024 rows is the per-step sweet spot
    t = min(t, _round_up(n, 8))     # never exceed the (padded) batch
    return int(max(8, (t // 8) * 8))


def label_smoothing_lmsce_loss(logits, target, *, eps=EPS,
                               reg_lambda=REG_LAMBDA, tile_n=None,
                               num_core_groups=2):
    """logits: (N, C) float (f32 or bf16), target: (N,) int -> scalar f32."""
    N, C = logits.shape
    t2 = target.astype(jnp.int32).reshape(N, 1)

    if tile_n is None:
        tile_n = _pick_tile_n(N, C)
    num_tiles = int(pl.cdiv(N, tile_n))
    # Leading parallel axis: v7x's two TensorCores split the batch.  Keep it a
    # divisor of num_tiles so every block index stays in bounds.
    P = num_core_groups if (num_tiles >= num_core_groups
                            and num_tiles % num_core_groups == 0) else 1
    I = num_tiles // P

    kernel = functools.partial(
        _loss_kernel, c_total=C, n_valid=N, tile_n=tile_n, tiles_per_group=I,
        eps=float(eps), reg_lambda=float(reg_lambda))

    # TODO(synk): for vocab-scale C (where even an (8, C) f32 tile exceeds the
    # VMEM budget) add a class-tile grid axis with online-softmax carries.
    partials = pl.pallas_call(
        kernel,
        out_shape=jax.ShapeDtypeStruct((P, 1, 1), jnp.float32),
        grid_spec=pltpu.PrefetchScalarGridSpec(
            num_scalar_prefetch=0,
            grid=(P, I),
            in_specs=[
                pl.BlockSpec((tile_n, C), lambda p, i: (p * I + i, 0)),  # logits
                pl.BlockSpec((tile_n, 1), lambda p, i: (p * I + i, 0)),  # targets
            ],
            out_specs=pl.BlockSpec((1, 1, 1), lambda p, i: (p, 0, 0)),
        ),
        compiler_params=pltpu.CompilerParams(
            dimension_semantics=("parallel", "arbitrary"),
            vmem_limit_bytes=32 * 1024 * 1024),
    )(logits, t2)

    # per-group partial sums -> mean over the true batch size
    return jnp.sum(partials) / jnp.float32(N)


def _reference(logits, target, eps=EPS, reg_lambda=REG_LAMBDA):
    """Pure-JAX reference mirroring the PyTorch module (incl. BIG_NEG trick)."""
    N, C = logits.shape
    x = logits.astype(jnp.float32)
    lp = jax.nn.log_softmax(x, axis=-1)
    ls = -lp.sum(axis=-1)
    mask = jax.nn.one_hot(target, C, dtype=jnp.float32)
    lp2 = jax.nn.log_softmax(lp, axis=-1)
    ce = -(lp2 * mask).sum(-1)
    X = lp - BIG_NEG * mask
    sm = jax.nn.softmax(X, axis=-1)
    lsm = jax.nn.log_softmax(X, axis=-1)
    reg = 0.5 * ((sm - 1.0 / (C - 1)) * lsm * (1.0 - mask)).sum(-1)
    return ls.mean() * eps / C + (1.0 - eps) * (ce.mean() + reg_lambda * reg.mean())


if __name__ == "__main__":
    key = jax.random.PRNGKey(0)
    k1, k2, k3, k4 = jax.random.split(key, 4)

    # small shapes consistent with a (batch, num_classes) classification loss
    N, C = 16, 32
    logits = jax.random.normal(k1, (N, C), dtype=jnp.float32)
    target = jax.random.randint(k2, (N,), 0, C, dtype=jnp.int32)

    loss = jax.block_until_ready(label_smoothing_lmsce_loss(logits, target))
    ref = _reference(logits, target)
    assert jnp.allclose(loss, ref, rtol=2e-3, atol=2e-3), (loss, ref)

    # ragged batch: exercises the masked tail (no divisibility requirement)
    N2 = 13
    logits2 = jax.random.normal(k3, (N2, C), dtype=jnp.float32)
    target2 = jax.random.randint(k4, (N2,), 0, C, dtype=jnp.int32)
    loss2 = jax.block_until_ready(label_smoothing_lmsce_loss(logits2, target2))
    ref2 = _reference(logits2, target2)
    assert jnp.allclose(loss2, ref2, rtol=2e-3, atol=2e-3), (loss2, ref2)

    print("KERNEL_OK")
</pallas_src>

<mosaic_0001>
module attributes {stable_mosaic.version = 11 : i64} {
  func.func @_loss_kernel(%arg0: i32, %arg1: i32, %arg2: memref<16x32xf32, #tpu.memory_space<vmem>>, %arg3: memref<16x1xi32, #tpu.memory_space<vmem>>, %arg4: memref<1x1x1xf32, #tpu.memory_space<vmem>>) attributes {dimension_semantics = [#tpu.dimension_semantics<parallel>, #tpu.dimension_semantics<arbitrary>], iteration_bounds = array<i64: 1, 1>, scalar_prefetch = 0 : i64, scratch_operands = 0 : i64, tpu.core_type = #tpu.core_type<tc>, window_params = [{transform_indices = @transform_0, window_bounds = array<i64: 16, 32>}, {transform_indices = @transform_1, window_bounds = array<i64: 16, 1>}, {transform_indices = @transform_2, window_bounds = array<i64: 1, 1, 1>}]} {
    %c0_i32 = arith.constant 0 : i32
    %0 = arith.cmpi eq, %arg1, %c0_i32 : i32
    %1 = arith.extui %0 : i1 to i32
    %c0_i32_0 = arith.constant 0 : i32
    %2 = arith.cmpi ne, %1, %c0_i32_0 : i32
    scf.if %2 {
      %cst_28 = arith.constant 0.000000e+00 : f32
      %85 = vector.broadcast %cst_28 : f32 to vector<1x1x1xf32>
      %c0_29 = arith.constant 0 : index
      %c0_30 = arith.constant 0 : index
      %c0_31 = arith.constant 0 : index
      %86 = vector.load %arg4[%c0_29, %c0_30, %c0_31] : memref<1x1x1xf32, #tpu.memory_space<vmem>>, vector<1x1x1xf32>
      tpu.vector_store %arg4[%c0_29, %c0_30, %c0_31], %85 {strides = array<i32>} : memref<1x1x1xf32, #tpu.memory_space<vmem>>, vector<1x1x1xf32>,
    } else {
    }
    %c0 = arith.constant 0 : index
    %c0_1 = arith.constant 0 : index
    %3 = vector.load %arg2[%c0, %c0_1] : memref<16x32xf32, #tpu.memory_space<vmem>>, vector<16x32xf32>
    %c0_2 = arith.constant 0 : index
    %c0_3 = arith.constant 0 : index
    %4 = vector.load %arg3[%c0_2, %c0_3] : memref<16x1xi32, #tpu.memory_space<vmem>>, vector<16x1xi32>
    %5 = tpu.iota {dimensions = array<i32: 1>} : vector<16x32xi32>
    %6 = vector.broadcast %4 : vector<16x1xi32> to vector<16x32xi32>
    %7 = arith.cmpi eq, %5, %6 : vector<16x32xi32>
    %cst = arith.constant dense<0xFF800000> : vector<16xf32>
    %8 = vector.multi_reduction <maximumf>, %3, %cst [1] : vector<16x32xf32> to vector<16xf32>
    %9 = vector.shape_cast %8 : vector<16xf32> to vector<16x1xf32>
    %10 = vector.broadcast %9 : vector<16x1xf32> to vector<16x32xf32>
    %11 = arith.subf %3, %10 : vector<16x32xf32>
    %12 = math.exp %11 : vector<16x32xf32>
    %cst_4 = arith.constant dense<0.000000e+00> : vector<16xf32>
    %13 = vector.multi_reduction <add>, %12, %cst_4 [1] : vector<16x32xf32> to vector<16xf32>
    %14 = vector.shape_cast %13 : vector<16xf32> to vector<16x1xf32>
    %cst_5 = arith.constant dense<0.000000e+00> : vector<16xf32>
    %15 = vector.multi_reduction <add>, %11, %cst_5 [1] : vector<16x32xf32> to vector<16xf32>
    %16 = vector.shape_cast %15 : vector<16xf32> to vector<16x1xf32>
    %17 = arith.mulf %12, %11 : vector<16x32xf32>
    %cst_6 = arith.constant dense<0.000000e+00> : vector<16xf32>
    %18 = vector.multi_reduction <add>, %17, %cst_6 [1] : vector<16x32xf32> to vector<16xf32>
    %19 = vector.shape_cast %18 : vector<16xf32> to vector<16x1xf32>
    %cst_7 = arith.constant 0.000000e+00 : f32
    %20 = vector.broadcast %cst_7 : f32 to vector<16x32xf32>
    %21 = arith.select %7, %11, %20 : vector<16x32xi1>, vector<16x32xf32>
    %cst_8 = arith.constant dense<0.000000e+00> : vector<16xf32>
    %22 = vector.multi_reduction <add>, %21, %cst_8 [1] : vector<16x32xf32> to vector<16xf32>
    %23 = vector.shape_cast %22 : vector<16xf32> to vector<16x1xf32>
    %24 = math.log %14 : vector<16x1xf32>
    %25 = tpu.reciprocal %14 {approx = true} : vector<16x1xf32> -> vector<16x1xf32>
    %cst_9 = arith.constant 3.200000e+01 : f32
    %26 = vector.broadcast %cst_9 : f32 to vector<16x1xf32>
    %27 = arith.mulf %26, %24 : vector<16x1xf32>
    %28 = arith.subf %16, %27 : vector<16x1xf32>
    %cst_10 = arith.constant 0.000000e+00 : f32
    %29 = vector.broadcast %cst_10 : f32 to vector<16x1xf32>
    %30 = arith.subf %29, %28 : vector<16x1xf32>
    %31 = arith.subf %23, %24 : vector<16x1xf32>
    %cst_11 = arith.constant 0.000000e+00 : f32
    %32 = vector.broadcast %cst_11 : f32 to vector<16x1xf32>
    %33 = arith.subf %32, %31 : vector<16x1xf32>
    %34 = math.exp %23 : vector<16x1xf32>
    %35 = arith.mulf %34, %25 : vector<16x1xf32>
    %36 = arith.subf %14, %34 : vector<16x1xf32>
    %cst_12 = arith.constant 9.99999996E-13 : f32
    %37 = vector.broadcast %cst_12 : f32 to vector<16x1xf32>
    %38 = arith.maximumf %36, %37 : vector<16x1xf32>
    %39 = tpu.reciprocal %38 {approx = true} : vector<16x1xf32> -> vector<16x1xf32>
    %40 = arith.mulf %14, %39 : vector<16x1xf32>
    %41 = math.log %38 : vector<16x1xf32>
    %42 = arith.subf %41, %24 : vector<16x1xf32>
    %43 = arith.mulf %25, %19 : vector<16x1xf32>
    %44 = arith.subf %43, %24 : vector<16x1xf32>
    %45 = arith.mulf %35, %31 : vector<16x1xf32>
    %46 = arith.subf %44, %45 : vector<16x1xf32>
    %47 = arith.subf %28, %31 : vector<16x1xf32>
    %48 = arith.mulf %40, %46 : vector<16x1xf32>
    %49 = arith.subf %48, %42 : vector<16x1xf32>
    %cst_13 = arith.constant 3.100000e+01 : f32
    %50 = vector.broadcast %cst_13 : f32 to vector<16x1xf32>
    %51 = arith.mulf %50, %42 : vector<16x1xf32>
    %52 = arith.subf %47, %51 : vector<16x1xf32>
    %cst_14 = arith.constant 0.0322580636 : f32
    %53 = vector.broadcast %cst_14 : f32 to vector<16x1xf32>
    %54 = arith.mulf %53, %52 : vector<16x1xf32>
    %55 = arith.subf %49, %54 : vector<16x1xf32>
    %cst_15 = arith.constant 5.000000e-01 : f32
    %56 = vector.broadcast %cst_15 : f32 to vector<16x1xf32>
    %57 = arith.mulf %56, %55 : vector<16x1xf32>
    %cst_16 = arith.constant 3.125000e-03 : f32
    %58 = vector.broadcast %cst_16 : f32 to vector<16x1xf32>
    %59 = arith.mulf %58, %30 : vector<16x1xf32>
    %cst_17 = arith.constant 3.000000e-01 : f32
    %60 = vector.broadcast %cst_17 : f32 to vector<16x1xf32>
    %61 = arith.mulf %60, %57 : vector<16x1xf32>
    %62 = arith.addf %33, %61 : vector<16x1xf32>
    %cst_18 = arith.constant 0.899999976 : f32
    %63 = vector.broadcast %cst_18 : f32 to vector<16x1xf32>
    %64 = arith.mulf %63, %62 : vector<16x1xf32>
    %65 = arith.addf %59, %64 : vector<16x1xf32>
    %c1_i32 = arith.constant 1 : i32
    %66 = arith.muli %arg0, %c1_i32 : i32
    %67 = arith.addi %66, %arg1 : i32
    %c16_i32 = arith.constant 16 : i32
    %68 = arith.muli %67, %c16_i32 : i32
    %69 = tpu.iota {dimensions = array<i32: 0>} : vector<16x1xi32>
    %70 = vector.broadcast %68 : i32 to vector<16x1xi32>
    %71 = arith.addi %70, %69 : vector<16x1xi32>
    %c16_i32_19 = arith.constant 16 : i32
    %72 = vector.broadcast %c16_i32_19 : i32 to vector<16x1xi32>
    %73 = arith.cmpi slt, %71, %72 : vector<16x1xi32>
    %cst_20 = arith.constant 0.000000e+00 : f32
    %74 = vector.broadcast %cst_20 : f32 to vector<16x1xf32>
    %75 = arith.select %73, %65, %74 : vector<16x1xi1>, vector<16x1xf32>
    %76 = vector.shape_cast %75 : vector<16x1xf32> to vector<1x16x1xf32>
    %cst_21 = arith.constant dense<0.000000e+00> : vector<1xf32>
    %77 = vector.multi_reduction <add>, %76, %cst_21 [1, 2] : vector<1x16x1xf32> to vector<1xf32>
    %78 = vector.shape_cast %77 : vector<1xf32> to vector<1x1x1xf32>
    %79 = vector.extract %78[0, 0, 0] : f32 from vector<1x1x1xf32>
    %80 = vector.broadcast %79 : f32 to vector<1x1xf32>
    %c0_22 = arith.constant 0 : index
    %c0_23 = arith.constant 0 : index
    %c0_24 = arith.constant 0 : index
    %81 = vector.load %arg4[%c0_22, %c0_23, %c0_24] : memref<1x1x1xf32, #tpu.memory_space<vmem>>, vector<1x1x1xf32>
    %82 = vector.shape_cast %80 : vector<1x1xf32> to vector<1x1x1xf32>
    %83 = arith.addf %81, %82 : vector<1x1x1xf32>
    %c0_25 = arith.constant 0 : index
    %c0_26 = arith.constant 0 : index
    %c0_27 = arith.constant 0 : index
    %84 = vector.load %arg4[%c0_25, %c0_26, %c0_27] : memref<1x1x1xf32, #tpu.memory_space<vmem>>, vector<1x1x1xf32>
    tpu.vector_store %arg4[%c0_25, %c0_26, %c0_27], %83 {strides = array<i32>} : memref<1x1x1xf32, #tpu.memory_space<vmem>>, vector<1x1x1xf32>,
    return
  }
  func.func @transform_0(%arg0: i32, %arg1: i32) -> (i32, i32) {
    %c1_i32 = arith.constant 1 : i32
    %0 = arith.muli %arg0, %c1_i32 : i32
    %1 = arith.addi %0, %arg1 : i32
    %c0_i32 = arith.constant 0 : i32
    %c0_i32_0 = arith.constant 0 : i32
    return %1, %c0_i32 : i32, i32
  }
  func.func @transform_1(%arg0: i32, %arg1: i32) -> (i32, i32) {
    %c1_i32 = arith.constant 1 : i32
    %0 = arith.muli %arg0, %c1_i32 : i32
    %1 = arith.addi %0, %arg1 : i32
    %c0_i32 = arith.constant 0 : i32
    %c0_i32_0 = arith.constant 0 : i32
    return %1, %c0_i32 : i32, i32
  }
  func.func @transform_2(%arg0: i32, %arg1: i32) -> (i32, i32, i32) {
    %c0_i32 = arith.constant 0 : i32
    %c0_i32_0 = arith.constant 0 : i32
    %c0_i32_1 = arith.constant 0 : i32
    return %arg0, %c0_i32, %c0_i32_0 : i32, i32, i32
  }
}

</mosaic_0001>

<llo_original>
// kernel: tpu_custom_call.1
$region0: #{tpu_custom_call.1}
  #allocation0 [shape = 'u32[]', space=smem, size = 0x4, offset = 0x4, fixed_abs, tag = 'smem constant byte address 0x4 - core index']
  #allocation1 [shape = 'u32[144,128]{1,0:T(1,128)}', space=vmem, size = 0x12000, scoped, tag = 'internal scratch']
  %s0 = inlined_call_operand.vmem [shape: f32[16,32], index: 0, kind: input, shape index: {}]
  %s1 = inlined_call_operand.vmem [shape: s32[16,1], index: 1, kind: input, shape index: {}]
  %s2 = inlined_call_operand.hbm [shape: f32[1,1,1], index: 2, kind: output, shape index: {}]
  %s3 = sld [smem:[#allocation0]]
  $region22: #{tpu_custom_call.1} parent=0
    _
  %s5 = ssub.s32 1, %s3
  %s6 = scalar_select 0, %s5, %s3
  $region1: #{tpu_custom_call.1} parent=0
    #allocation2 [shape = 'u8[512]{0}', space=vmem, size = 0x400, scoped, tag = 'output window, operand 0, single buffered']
    #allocation3 [shape = 's32[1]{0}', space=sflag, size = 0x4, scoped, tag = 'scoped memory for tpu_custom_call.1']
    %7 = vsyncpa [#allocation3], 0
    // Predicated region
    $region2: #{tpu_custom_call.1} parent=1 // pred_check
      _
    $region3: #{tpu_custom_call.1} parent=1 // pred_check_branch
      %9 = sbr.rel (0) target = $region5
    $region4: #{tpu_custom_call.1} parent=1 // pred_region
      %s10 = sadd.s32 0, 0
      %s11 = smul.u32 2, %s10
      %p12 = scmp.lt.s32.totalorder %s11, 1
      %s13 = scalar_select %p12, %s11, 1
      %s14 = smul.addr %s13, 8
      %s15 = scalar_lea.vmem %s0, %s14
      %s16 = sadd.s32 0, 0
      %s17 = smul.u32 2, %s16
    $region5: #{tpu_custom_call.1} parent=1 // pred_fallthru
      _
    // Predicated region
    $region6: #{tpu_custom_call.1} parent=1 // pred_check
      _
    $region7: #{tpu_custom_call.1} parent=1 // pred_check_branch
      %19 = sbr.rel (0) target = $region9
    $region8: #{tpu_custom_call.1} parent=1 // pred_region
      %s20 = sadd.s32 0, 0
      %s21 = smul.u32 2, %s20
      %p22 = scmp.lt.s32.totalorder %s21, 1
      %s23 = scalar_select %p22, %s21, 1
      %s24 = smul.addr %s23, 8
      %s25 = scalar_lea.vmem %s1, %s24
      %s26 = sadd.s32 0, 0
      %s27 = smul.u32 2, %s26
    $region9: #{tpu_custom_call.1} parent=1 // pred_fallthru
      _
    %s28 = sadd.s32 0, 0
    %s29 = smul.u32 2, %s28
    %p30 = scmp.lt.s32.totalorder %s29, 1
    %s31 = scalar_select %p30, %s29, 1
    %s32 = smul.addr %s31, 8
    %s33 = scalar_lea.vmem %s0, %s32
    %s34 = sadd.s32 0, 0
    %s35 = smul.u32 2, %s34
    %p36 = scmp.lt.s32.totalorder %s35, 1
    %s37 = scalar_select %p36, %s35, 1
    %s38 = smul.addr %s37, 8
    %s39 = scalar_lea.vmem %s1, %s38
    %s40 = sadd.s32 0, 0
    %s41 = smul.u32 2, %s40
    %p42 = scmp.lt.s32.totalorder %s41, 1
    %s43 = scalar_select %p42, %s41, 1
    %s44 = smul.addr %s43, 8
    %s45 = scalar_lea.vmem %s0, %s44
    %s46 = sadd.s32 0, 0
    %s47 = smul.u32 2, %s46
    %s48 = sadd.s32 0, 0
    %s49 = smul.u32 2, %s48
    %p50 = scmp.lt.s32.totalorder %s49, 1
    %s51 = scalar_select %p50, %s49, 1
    %s52 = smul.addr %s51, 8
    %s53 = scalar_lea.vmem %s1, %s52
    %s54 = sadd.s32 0, 0
    %s55 = smul.u32 2, %s54
    %p56 = scmp.eq.s32.totalorder 0, 0
    // Predicated region
    $region10: #{tpu_custom_call.1} parent=1 // pred_check
      %p57 = pneg %p56
    $region11: #{tpu_custom_call.1} parent=1 // pred_check_branch
      %59 = sbr.rel (%p57) target = $region13
    $region12: #{tpu_custom_call.1} parent=1 // pred_region
      %vm60 = vcmask 0
      %61 = vst.msk [vmem:[#allocation2] sm:$0x1] %vm60, 0.0
    $region13: #{tpu_custom_call.1} parent=1 // pred_fallthru
      _
    %v62 = vld [vmem:[%s45] sm:$0xff]
    %v63 = vld [vmem:[%s45 + $0x8] sm:$0xff]
    %v64 = vld [vmem:[%s53] sm:$0xff]
    %v65 = vld [vmem:[%s53 + $0x8] sm:$0xff]
    %v66 = vlaneseq
    %v67 = vand.u32 %v66, 127
    %68 = vset.pattern.permute.xlu0 0
    %69 = vperm.xlu0 %68, %v64
    %v70 = vpop.permute.xlu0 %69
    %71 = vset.pattern.permute.xlu0 0
    %72 = vperm.xlu0 %71, %v65
    %v73 = vpop.permute.xlu0 %72
    %vm74 = vcmp.eq.s32.totalorder %v67, %v70
    %vm75 = vcmp.eq.s32.totalorder %v67, %v73
    %vm76 = vcmask 261120
    %v77 = vsel %vm76, %v62, -inf
    %78 = vmax.xlane.f32.xlu0 %v77
    %v79 = vpop.xlane.xlu0 %78
    %v80 = vsel %vm76, %v63, -inf
    %81 = vmax.xlane.f32.xlu0 %v80
    %v82 = vpop.xlane.xlu0 %81
    %v83 = vsub.f32 %v62, %v79
    %v84 = vsub.f32 %v63, %v82
    %v85 = vmul.f32 %v83, 1.442695
    %v86 = vpow.pop %v85
    %v87 = vmul.f32 %v84, 1.442695
    %v88 = vpow.pop %v87
    %v89 = vsel %vm76, %v86, 0.0
    %90 = vadd.xlane.f32.xlu0 %v89
    %v91 = vpop.xlane.xlu0 %90
    %v92 = vsel %vm76, %v88, 0.0
    %93 = vadd.xlane.f32.xlu0 %v92
    %v94 = vpop.xlane.xlu0 %93
    %v95 = vsel %vm76, %v83, 0.0
    %96 = vadd.xlane.f32.xlu0 %v95
    %v97 = vpop.xlane.xlu0 %96
    %v98 = vsel %vm76, %v84, 0.0
    %99 = vadd.xlane.f32.xlu0 %v98
    %v100 = vpop.xlane.xlu0 %99
    %v101 = vmul.f32 %v86, %v83
    %v102 = vmul.f32 %v88, %v84
    %v103 = vsel %vm76, %v101, 0.0
    %104 = vadd.xlane.f32.xlu0 %v103
    %v105 = vpop.xlane.xlu0 %104
    %v106 = vsel %vm76, %v102, 0.0
    %107 = vadd.xlane.f32.xlu0 %v106
    %v108 = vpop.xlane.xlu0 %107
    %v109 = vsel %vm74, %v83, 0.0
    %v110 = vsel %vm75, %v84, 0.0
    %v111 = vsel %vm76, %v109, 0.0
    %112 = vadd.xlane.f32.xlu0 %v111
    %v113 = vpop.xlane.xlu0 %112
    %v114 = vsel %vm76, %v110, 0.0
    %115 = vadd.xlane.f32.xlu0 %v114
    %v116 = vpop.xlane.xlu0 %115
    %v117 = vlog2.pop %v91
    %v118 = vmul.f32 %v117, 0.6931472
    %v119 = vlog2.pop %v94
    %v120 = vmul.f32 %v119, 0.6931472
    %v121 = vrcp.pop %v91
    %v122 = vrcp.pop %v94
    %v123 = vmul.f32 %v118, 32.0
    %v124 = vmul.f32 %v120, 32.0
    %v125 = vsub.f32 %v97, %v123
    %v126 = vsub.f32 %v100, %v124
    %v127 = vsub.f32 0.0, %v125
    %v128 = vsub.f32 0.0, %v126
    %v129 = vsub.f32 %v113, %v118
    %v130 = vsub.f32 %v116, %v120
    %v131 = vsub.f32 0.0, %v129
    %v132 = vsub.f32 0.0, %v130
    %v133 = vmul.f32 %v113, 1.442695
    %v134 = vpow.pop %v133
    %v135 = vmul.f32 %v116, 1.442695
    %v136 = vpow.pop %v135
    %v137 = vmul.f32 %v134, %v121
    %v138 = vmul.f32 %v136, %v122
    %v139 = vsub.f32 %v91, %v134
    %v140 = vsub.f32 %v94, %v136
    %v141 = vmax.f32 %v139, 1e-12
    %v142 = vmax.f32 %v140, 1e-12
    %v143 = vrcp.pop %v141
    %v144 = vrcp.pop %v142
    %v145 = vmul.f32 %v91, %v143
    %v146 = vmul.f32 %v94, %v144
    %v147 = vlog2.pop %v141
    %v148 = vmul.f32 %v147, 0.6931472
    %v149 = vlog2.pop %v142
    %v150 = vmul.f32 %v149, 0.6931472
    %v151 = vsub.f32 %v148, %v118
    %v152 = vsub.f32 %v150, %v120
    %v153 = vmul.f32 %v121, %v105
    %v154 = vmul.f32 %v122, %v108
    %v155 = vsub.f32 %v153, %v118
    %v156 = vsub.f32 %v154, %v120
    %v157 = vmul.f32 %v137, %v129
    %v158 = vmul.f32 %v138, %v130
    %v159 = vsub.f32 %v155, %v157
    %v160 = vsub.f32 %v156, %v158
    %v161 = vsub.f32 %v125, %v129
    %v162 = vsub.f32 %v126, %v130
    %v163 = vmul.f32 %v145, %v159
    %v164 = vmul.f32 %v146, %v160
    %v165 = vsub.f32 %v163, %v151
    %v166 = vsub.f32 %v164, %v152
    %v167 = vmul.f32 %v151, 31.0
    %v168 = vmul.f32 %v152, 31.0
    %v169 = vsub.f32 %v161, %v167
    %v170 = vsub.f32 %v162, %v168
    %v171 = vmul.f32 %v169, 0.032258064
    %v172 = vmul.f32 %v170, 0.032258064
    %v173 = vsub.f32 %v165, %v171
    %v174 = vsub.f32 %v166, %v172
    %v175 = vmul.f32 %v173, 0.5
    %v176 = vmul.f32 %v174, 0.5
    %v177 = vmul.f32 %v127, 0.003125
    %v178 = vmul.f32 %v128, 0.003125
    %v179 = vmul.f32 %v175, 0.3
    %v180 = vmul.f32 %v176, 0.3
    %v181 = vadd.f32 %v131, %v179
    %v182 = vadd.f32 %v132, %v180
    %v183 = vmul.f32 %v181, 0.9
    %v184 = vmul.f32 %v182, 0.9
    %v185 = vadd.f32 %v177, %v183
    %v186 = vadd.f32 %v178, %v184
    %s187 = sadd.s32 0, 0
    %s188 = smul.u32 %s187, 16
    %v189 = vlaneseq
    %v190 = vshrl.u32 %v189, 7
    %v191 = vadd.s32 %v190, 8
    %v192 = vstv %s188
    %v193 = vadd.s32 %v192, %v190
    %v194 = vadd.s32 %v192, %v191
    %vm195 = vcmp.lt.s32.totalorder %v193, 16
    %vm196 = vcmp.lt.s32.totalorder %v194, 16
    %v197 = vsel %vm195, %v185, 0.0
    %v198 = vsel %vm196, %v186, 0.0
    %vm199 = vcmask 7168
    %v200 = vsel %vm199, %v197, 0.0
    %v201 = vsel %vm199, %v198, 0.0
    %v202 = vadd.f32 %v200, %v201
    %203 = vadd.xlane.f32.xlu0 %v202
    %v204 = vpop.xlane.xlu0 %203
    %v205 = vrot.slane %v204, 4
    %v206 = vadd.f32 %v204, %v205
    %v207 = vrot.slane %v206, 2
    %v208 = vadd.f32 %v206, %v207
    %v209 = vrot.slane %v208, 1
    %v210 = vadd.f32 %v208, %v209
    %s211 = vtos %v210
    %v212 = vld [vmem:[#allocation2] sm:$0x1]
    %v213 = vstv %s211
    %v214 = vadd.f32 %v212, %v213
    %vm215 = vcmask 0
    %216 = vst.msk [vmem:[#allocation2] sm:$0x1] %vm215, %v214
    // Predicated region
    $region14: #{tpu_custom_call.1} parent=1 // pred_check
      _
    $region15: #{tpu_custom_call.1} parent=1 // pred_check_branch
      %218 = sbr.rel (0) target = $region17
    $region16: #{tpu_custom_call.1} parent=1 // pred_region
      %s220 = ssub.s32 16, 16
      %221 = vsyncadd [#allocation3], %s220
      %s223 = sshll.u32 [#allocation2], 4
      %s224 = int_to_ptr.vmem [resolvable:$true] %s223
      %226 = dma.vmem_to_hbm [thread:$0]  %s224, 16, %s2, [#allocation3]
    $region17: #{tpu_custom_call.1} parent=1 // pred_fallthru
      _
    // Predicated region
    $region18: #{tpu_custom_call.1} parent=1 // pred_check
      _
    $region19: #{tpu_custom_call.1} parent=1 // pred_check_branch
      %228 = sbr.rel (0) target = $region21
    $region20: #{tpu_custom_call.1} parent=1 // pred_region
      %229 = dma.done [#allocation3], 16
    $region21: #{tpu_custom_call.1} parent=1 // pred_fallthru
      _
    %230 = vsyncpa [#allocation3], 1

</llo_original>
